<compile_context>
chip_gen: v6e
topology: v6e:2x2x1
jax: 0.10.0
libtpu: 0.0.40
codegen_flags: <defaults>
</compile_context>

<pallas_src>
import functools
import math

import numpy as np
import jax
import jax.numpy as jnp
from jax.experimental import pallas as pl
from jax.experimental.pallas import tpu as pltpu


_VMEM = pltpu.MemorySpace.VMEM
_SMEM = pltpu.MemorySpace.SMEM

_COARSE_TP = 128   # pred tile (sublanes)
_COARSE_TG = 128   # gt tile (lanes)


# ----------------------------------------------------------------------------- helpers

def _next_pow2(n):
    n = max(int(n), 1)
    return 1 << (n - 1).bit_length()


def _lane_bucket(n):
    """Lanes per sublane row so that 8*lanes >= n; power-of-two multiple of 128."""
    return 128 * _next_pow2(-(-max(int(n), 1) // 1024))


def _round_up(x, m):
    return ((int(x) + m - 1) // m) * m


def _pack_cloud(pts, lanes):
    """(N, 3) points -> dense (3, 8, lanes) f32 block (x/y/z each an 8 x lanes tile)."""
    n = pts.shape[0]
    flat = jnp.pad(pts.astype(jnp.float32).T, ((0, 0), (0, 8 * lanes - n)))
    return flat.reshape(3, 8, lanes)


def _valid_mask(shape, n_valid):
    sub = jax.lax.broadcasted_iota(jnp.int32, shape, 0)
    lane = jax.lax.broadcasted_iota(jnp.int32, shape, 1)
    return (sub * shape[1] + lane) < n_valid


# ----------------------------------------------------------------------------- kernels

def _fine_mask_kernel(src_ref, tgt_ref, prm_ref, mask_ref, cnt_ref, *, r2, n_valid):
    # src/tgt: (3, 8, L) f32 ; prm: (1, 12) f32 SMEM = [M row-major (9), t (3)]
    # mask_ref: (8, L) f32 inlier-and-valid mask ; cnt_ref: (1, 1) f32 SMEM inlier count.
    x, y, z = src_ref[0], src_ref[1], src_ref[2]
    tx = x * prm_ref[0, 0] + y * prm_ref[0, 1] + z * prm_ref[0, 2] + prm_ref[0, 9]
    ty = x * prm_ref[0, 3] + y * prm_ref[0, 4] + z * prm_ref[0, 5] + prm_ref[0, 10]
    tz = x * prm_ref[0, 6] + y * prm_ref[0, 7] + z * prm_ref[0, 8] + prm_ref[0, 11]
    dx = tgt_ref[0] - tx
    dy = tgt_ref[1] - ty
    dz = tgt_ref[2] - tz
    d2 = dx * dx + dy * dy + dz * dz                       # squared distances, no sqrt
    ok = jnp.logical_and(_valid_mask(d2.shape, n_valid), d2 < r2)
    m = jnp.where(ok, 1.0, 0.0).astype(jnp.float32)
    mask_ref[...] = m
    cnt_ref[0, 0] = jnp.sum(m)


def _ransac_count_kernel(src_ref, tgt_ref, prm_ref, cnt_ref, *, n_hyp, thr2, n_valid):
    # One launch for all hypotheses.  src/tgt: (3, 8, L) f32 ; prm: (n_hyp, 12) f32 SMEM
    # = [scale*R row-major (9), t (3)] per hypothesis ; cnt_ref: (1, n_hyp) f32 SMEM —
    # per-hypothesis inlier counts stored directly (no broadcast / select epilogue).
    x, y, z = src_ref[0], src_ref[1], src_ref[2]
    gx, gy, gz = tgt_ref[0], tgt_ref[1], tgt_ref[2]
    valid = jnp.where(_valid_mask(x.shape, n_valid), 1.0, 0.0).astype(jnp.float32)
    # Static unroll keeps ~13 live vregs with the dense layout; switch to a
    # lax.fori_loop over lane blocks if the RANSAC point budget ever grows past ~8k.
    for h in range(n_hyp):
        tx = x * prm_ref[h, 0] + y * prm_ref[h, 1] + z * prm_ref[h, 2] + prm_ref[h, 9]
        ty = x * prm_ref[h, 3] + y * prm_ref[h, 4] + z * prm_ref[h, 5] + prm_ref[h, 10]
        tz = x * prm_ref[h, 6] + y * prm_ref[h, 7] + z * prm_ref[h, 8] + prm_ref[h, 11]
        dx = gx - tx
        dy = gy - ty
        dz = gz - tz
        d2 = dx * dx + dy * dy + dz * dz
        cnt_ref[0, h] = jnp.sum(jnp.where(d2 < thr2, valid, 0.0))


def _masked_rmse_kernel(src_ref, tgt_ref, mask_ref, prm_ref, out_ref):
    # out_ref: (1, 2) f32 SMEM -> [sum of masked squared distances, masked count].
    x, y, z = src_ref[0], src_ref[1], src_ref[2]
    tx = x * prm_ref[0, 0] + y * prm_ref[0, 1] + z * prm_ref[0, 2] + prm_ref[0, 9]
    ty = x * prm_ref[0, 3] + y * prm_ref[0, 4] + z * prm_ref[0, 5] + prm_ref[0, 10]
    tz = x * prm_ref[0, 6] + y * prm_ref[0, 7] + z * prm_ref[0, 8] + prm_ref[0, 11]
    dx = tgt_ref[0] - tx
    dy = tgt_ref[1] - ty
    dz = tgt_ref[2] - tz
    d2 = dx * dx + dy * dy + dz * dz
    w = mask_ref[...]                                        # zero at padded lanes
    out_ref[0, 0] = jnp.sum(d2 * w)
    out_ref[0, 1] = jnp.sum(w)


def _coarse_hit_kernel(gt_t_ref, gt_s_ref, gt_o_ref, pred_t_ref, pred_s_ref,
                       out_ref, hit_ref, *, thr):
    # gt_*: (1, TG) blocks ; pred_*: (TP, 1) blocks ; out_ref: (1, 8, 128) per-pred-tile
    # hit sum ; hit_ref: (TP, 1) f32 scratch, reduction over gt tiles (axis 1 of grid).
    j = pl.program_id(1)

    @pl.when(j == 0)
    def _():
        hit_ref[...] = jnp.zeros_like(hit_ref)

    match = ((pred_t_ref[...] == gt_t_ref[...]) &
             (pred_s_ref[...] == gt_s_ref[...]) &
             (gt_o_ref[...] > thr))                          # (TP, TG)
    hit_ref[...] = jnp.maximum(
        hit_ref[...], jnp.max(match.astype(jnp.float32), axis=1, keepdims=True))

    @pl.when(j == pl.num_programs(1) - 1)
    def _():
        out_ref[...] = jnp.full(out_ref.shape, jnp.sum(hit_ref[...]), out_ref.dtype)


# ----------------------------------------------------------------------------- kernel wrappers

def _call_fine_kernel(src_pack, tgt_pack, m, t, r2, n_valid):
    lanes = src_pack.shape[-1]
    prm = jnp.concatenate([m.reshape(9), t.reshape(3)]).astype(jnp.float32).reshape(1, 12)
    mask, cnt = pl.pallas_call(
        functools.partial(_fine_mask_kernel, r2=float(r2), n_valid=int(n_valid)),
        out_shape=(jax.ShapeDtypeStruct((8, lanes), jnp.float32),
                   jax.ShapeDtypeStruct((1, 1), jnp.float32)),
        in_specs=[pl.BlockSpec(memory_space=_VMEM),
                  pl.BlockSpec(memory_space=_VMEM),
                  pl.BlockSpec(memory_space=_SMEM)],
        out_specs=(pl.BlockSpec(memory_space=_VMEM),
                   pl.BlockSpec(memory_space=_SMEM)),
    )(src_pack, tgt_pack, prm)
    return mask, cnt[0, 0]


def _call_ransac_kernel(src_pack, tgt_pack, prm, thr2, n_valid):
    n_hyp = prm.shape[0]
    cnt = pl.pallas_call(
        functools.partial(_ransac_count_kernel, n_hyp=int(n_hyp),
                          thr2=float(thr2), n_valid=int(n_valid)),
        out_shape=jax.ShapeDtypeStruct((1, n_hyp), jnp.float32),
        in_specs=[pl.BlockSpec(memory_space=_VMEM),
                  pl.BlockSpec(memory_space=_VMEM),
                  pl.BlockSpec(memory_space=_SMEM)],
        out_specs=pl.BlockSpec(memory_space=_SMEM),
    )(src_pack, tgt_pack, prm.astype(jnp.float32))
    return cnt[0]


def _call_rmse_kernel(src_pack, tgt_pack, mask_pack, prm12):
    sums = pl.pallas_call(
        _masked_rmse_kernel,
        out_shape=jax.ShapeDtypeStruct((1, 2), jnp.float32),
        in_specs=[pl.BlockSpec(memory_space=_VMEM),
                  pl.BlockSpec(memory_space=_VMEM),
                  pl.BlockSpec(memory_space=_VMEM),
                  pl.BlockSpec(memory_space=_SMEM)],
        out_specs=pl.BlockSpec(memory_space=_SMEM),
    )(src_pack, tgt_pack, mask_pack, prm12.astype(jnp.float32).reshape(1, 12))
    return sums[0, 0], sums[0, 1]


# ----------------------------------------------------------------------------- coarse

@functools.partial(jax.jit, static_argnames=("thr",))
def _coarse_precision_device(gt_idx, gt_ov, pred_t, pred_s, thr):
    g = gt_idx.shape[0]
    p = pred_t.shape[0]
    g_pad = _round_up(max(g, 1), _COARSE_TG)
    p_pad = _round_up(max(p, 1), _COARSE_TP)
    gt_t = jnp.full((1, g_pad), -1, jnp.int32).at[0, :g].set(gt_idx[:, 0].astype(jnp.int32))
    gt_s = jnp.full((1, g_pad), -1, jnp.int32).at[0, :g].set(gt_idx[:, 1].astype(jnp.int32))
    gt_o = jnp.full((1, g_pad), -1.0, jnp.float32).at[0, :g].set(gt_ov.astype(jnp.float32))
    pt = jnp.full((p_pad, 1), -7, jnp.int32).at[:p, 0].set(pred_t.astype(jnp.int32))
    ps = jnp.full((p_pad, 1), -7, jnp.int32).at[:p, 0].set(pred_s.astype(jnp.int32))
    n_pt = p_pad // _COARSE_TP
    n_gt = g_pad // _COARSE_TG
    tile_sums = pl.pallas_call(
        functools.partial(_coarse_hit_kernel, thr=float(thr)),
        grid=(n_pt, n_gt),
        out_shape=jax.ShapeDtypeStruct((n_pt, 8, 128), jnp.float32),
        in_specs=[pl.BlockSpec((1, _COARSE_TG), lambda i, j: (0, j)),
                  pl.BlockSpec((1, _COARSE_TG), lambda i, j: (0, j)),
                  pl.BlockSpec((1, _COARSE_TG), lambda i, j: (0, j)),
                  pl.BlockSpec((_COARSE_TP, 1), lambda i, j: (i, 0)),
                  pl.BlockSpec((_COARSE_TP, 1), lambda i, j: (i, 0))],
        out_specs=pl.BlockSpec((1, 8, 128), lambda i, j: (i, 0, 0)),
        scratch_shapes=[pltpu.VMEM((_COARSE_TP, 1), jnp.float32)],
        compiler_params=pltpu.CompilerParams(
            dimension_semantics=("parallel", "arbitrary")),
    )(gt_t, gt_s, gt_o, pt, ps)
    return jnp.sum(tile_sums[:, 0, 0]) / p


# ----------------------------------------------------------------------------- shared cores

def _umeyama_batch(a, b):
    # a, b: (H, k, 3) — closed-form similarity transform per hypothesis (SVD stays in JAX).
    k = a.shape[1]
    ca = jnp.mean(a, axis=1, keepdims=True)
    cb = jnp.mean(b, axis=1, keepdims=True)
    a0 = a - ca
    b0 = b - cb
    sxy = jnp.einsum('hki,hkj->hij', b0, a0) / k
    sign = jnp.where(jnp.linalg.det(sxy) < 0, -1.0, 1.0)              # (H,)
    u, d, vh = jnp.linalg.svd(sxy)
    u_mod = u.at[:, :, 2].multiply(sign[:, None])                     # U @ diag(1,1,sign)
    r = jnp.einsum('hij,hjk->hik', u_mod, vh)
    sigma_x = jnp.mean(jnp.sum(a0 * a0, axis=2), axis=1)
    scale = (d[:, 0] + d[:, 1] + d[:, 2] * sign) / sigma_x
    t = cb[:, 0, :] - scale[:, None] * jnp.einsum('hij,hj->hi', r, ca[:, 0, :])
    return r, t, scale


def rotation_error(r_est, r_gt):
    tr = jnp.trace(r_est.T @ r_gt)
    cos = jnp.clip((tr - 1.0) * 0.5, -1.0, 1.0)
    return jnp.degrees(jnp.arccos(cos))


def translation_error(t_est, t_gt):
    return jnp.linalg.norm(t_est.reshape(-1) - t_gt.reshape(-1))


def _fine_core(src_corr, tgt_corr, m, t, r2):
    n = src_corr.shape[0]
    lanes = _lane_bucket(n)
    src_pack = _pack_cloud(src_corr, lanes)
    tgt_pack = _pack_cloud(tgt_corr, lanes)
    mask_pack, cnt = _call_fine_kernel(src_pack, tgt_pack, m, t, r2, n)
    precision = cnt / n
    return precision, mask_pack, src_pack, tgt_pack


def _registration_core(src_corr, tgt_corr, src_pack, tgt_pack, mask_pack,
                       sub_idx, sel, rot_data, trans_gt, thr2):
    n_sub = sub_idx.shape[0]
    n_hyp = sel.shape[0]
    sub_a = src_corr[sub_idx]
    sub_b = tgt_corr[sub_idx]
    r_h, t_h, s_h = _umeyama_batch(sub_a[sel], sub_b[sel])
    prm = jnp.concatenate([(s_h[:, None, None] * r_h).reshape(n_hyp, 9), t_h], axis=1)
    lanes = _lane_bucket(n_sub)
    counts = _call_ransac_kernel(_pack_cloud(sub_a, lanes), _pack_cloud(sub_b, lanes),
                                 prm, thr2, n_sub)
    best = jnp.argmax(counts)
    rot_est, t_est, scale_est = r_h[best], t_h[best], s_h[best]

    # GT sim3 decomposition.
    u, s_gt, vh = jnp.linalg.svd(rot_data, full_matrices=True)
    scale_gt = s_gt[0]
    rot_gt = u @ vh
    rot_gt = jnp.where(jnp.linalg.det(rot_gt) < 0, -rot_gt, rot_gt)
    scale_error = jnp.abs(scale_est - scale_gt)

    # Masked registration RMSE — faithful to the original, which swaps tgt/src here.
    prm_est = jnp.concatenate([(scale_est * rot_est).reshape(9), t_est])
    d2_sum, m_cnt = _call_rmse_kernel(tgt_pack, src_pack, mask_pack, prm_est)
    rmse = jnp.where(m_cnt > 0, jnp.sqrt(d2_sum / jnp.maximum(m_cnt, 1.0)), jnp.inf)

    rot_error = rotation_error(rot_est, rot_gt)
    trans_error = translation_error(t_est, trans_gt)
    return rot_error, trans_error, scale_error, rmse, rot_est, t_est


# ----------------------------------------------------------------------------- jit entry points

@functools.partial(jax.jit, static_argnames=("r2",))
def _fine_eval_device(src, tgt, m, t, r2):
    n = src.shape[0]
    precision, mask_pack, _, _ = _fine_core(src, tgt, m, t, r2)
    gt_corrs = mask_pack.reshape(-1)[:n] > 0.5
    return precision, gt_corrs


@functools.partial(jax.jit, static_argnames=("thr2",))
def _ransac_device(pts_a, pts_b, sel, thr2):
    n = pts_a.shape[0]
    n_hyp = sel.shape[0]
    r_h, t_h, s_h = _umeyama_batch(pts_a[sel], pts_b[sel])
    prm = jnp.concatenate([(s_h[:, None, None] * r_h).reshape(n_hyp, 9), t_h], axis=1)
    lanes = _lane_bucket(n)
    counts = _call_ransac_kernel(_pack_cloud(pts_a, lanes), _pack_cloud(pts_b, lanes),
                                 prm, thr2, n)
    best = jnp.argmax(counts)
    return r_h[best], t_h[best], s_h[best]


@functools.partial(jax.jit, static_argnames=("thr2",))
def _registration_device(src, tgt, gt_mask, sub_idx, sel, rot_data, trans_gt, thr2):
    n = src.shape[0]
    lanes = _lane_bucket(n)
    src_pack = _pack_cloud(src, lanes)
    tgt_pack = _pack_cloud(tgt, lanes)
    mask_pack = jnp.pad(gt_mask.astype(jnp.float32), (0, 8 * lanes - n)).reshape(8, lanes)
    return _registration_core(src, tgt, src_pack, tgt_pack, mask_pack,
                              sub_idx, sel, rot_data, trans_gt, thr2)


@functools.partial(jax.jit, static_argnames=("r2", "thr2", "rot_thr", "trans_thr"))
def _forward_device(src, tgt, sub_idx, sel, rot_data, trans_gt,
                    *, r2, thr2, rot_thr, trans_thr):
    # Fine eval -> RANSAC -> GT decomposition -> masked RMSE -> errors -> booleans,
    # all fused in one device program (no intermediate host round-trips).
    precision, mask_pack, src_pack, tgt_pack = _fine_core(src, tgt, rot_data, trans_gt, r2)
    rot_error, trans_error, scale_error, rmse, rot_est, t_est = _registration_core(
        src, tgt, src_pack, tgt_pack, mask_pack, sub_idx, sel, rot_data, trans_gt, thr2)
    fmr = precision > 0.05
    rr = jnp.logical_and(jnp.logical_and(rot_error < rot_thr, trans_error < trans_thr),
                         scale_error < 0.05)
    rr_rmse = rmse < 0.2
    return {"precision": precision, "rot_error": rot_error, "trans_error": trans_error,
            "scale_error": scale_error, "rmse": rmse, "rot_est": rot_est, "t_est": t_est,
            "fmr": fmr, "rr": rr, "rr_rmse": rr_rmse}


# ----------------------------------------------------------------------------- module

class Cfg:
    eval_acceptance_overlap = 0.1
    eval_acceptance_radius = 0.1
    n_points_registration = 64
    distance_threshold = 0.05
    ransac_n = 4
    rot_thresh = 15.0
    trans_thresh = 0.3
    colabsfm_mode = "sim3"


class EvaluatorRegistration:
    def __init__(self, cfg, return_pose=False):
        self.acceptance_overlap = cfg.eval_acceptance_overlap
        self.acceptance_radius = cfg.eval_acceptance_radius
        self.n_points = cfg.n_points_registration
        self.distance_threshold = cfg.distance_threshold
        self.ransac_n = cfg.ransac_n
        self.rot_thresh = cfg.rot_thresh
        self.trans_thresh = cfg.trans_thresh
        self.mode = cfg.colabsfm_mode
        self.return_pose = return_pose

    # -------------------------------------------------- coarse
    def evaluate_coarse(self, output_dict):
        return _coarse_precision_device(
            jnp.asarray(output_dict["gt_node_corr_indices"], jnp.int32),
            jnp.asarray(output_dict["gt_node_corr_overlaps"], jnp.float32),
            jnp.asarray(output_dict["tgt_node_corr_indices"], jnp.int32),
            jnp.asarray(output_dict["src_node_corr_indices"], jnp.int32),
            thr=float(self.acceptance_overlap))

    # -------------------------------------------------- fine (standalone API)
    def evaluate_fine(self, output_dict, data_dict):
        rot, trans = data_dict["rot"][0], data_dict["trans"][0]
        src = output_dict["src_corr_points"]
        tgt = output_dict["tgt_corr_points"]
        if src.shape[0] == 0:
            return 0.0, jnp.zeros((0,), bool)
        return _fine_eval_device(
            jnp.asarray(src, jnp.float32), jnp.asarray(tgt, jnp.float32),
            jnp.asarray(rot, jnp.float32),
            jnp.asarray(trans, jnp.float32).reshape(-1),
            r2=float(self.acceptance_radius) ** 2)

    # -------------------------------------------------- host-side index selection
    def _host_selection(self, n):
        rng = np.random.default_rng(0)
        if n > self.n_points:
            sub_idx = rng.choice(n, self.n_points, replace=False)
        else:
            sub_idx = np.arange(n)
        n_sub = int(sub_idx.shape[0])
        # TODO(synk): adaptive max-iteration update (log(1-0.99)/log(1-ir^n)) omitted —
        # a fixed hypothesis budget is scored in a single fused device program instead.
        max_iter = 16
        sel = np.stack([rng.choice(n_sub, self.ransac_n, replace=False)
                        for _ in range(max_iter)])
        return jnp.asarray(sub_idx, jnp.int32), jnp.asarray(sel, jnp.int32)

    # -------------------------------------------------- ransac (standalone API)
    def ransac(self, pts_a, pts_b, npoints, threshold, max_iter=16):
        rng = np.random.default_rng(0)
        n = int(pts_b.shape[0])
        sel = np.stack([rng.choice(n, npoints, replace=False) for _ in range(max_iter)])
        return _ransac_device(jnp.asarray(pts_a, jnp.float32),
                              jnp.asarray(pts_b, jnp.float32),
                              jnp.asarray(sel, jnp.int32),
                              thr2=float(threshold) ** 2)

    # -------------------------------------------------- registration (standalone API)
    def evaluate_registration(self, output_dict, data_dict, gt_corrs):
        if self.mode != "sim3":
            # TODO(synk): open3d ransac_pose_estimation_correspondences has no Pallas/JAX
            # equivalent; only the 'sim3' branch is implemented.
            raise NotImplementedError("only colabsfm_mode == 'sim3' is implemented")
        rot_gt_raw, trans_gt = data_dict["rot"][0], data_dict["trans"][0]
        src = jnp.asarray(output_dict["src_corr_points"], jnp.float32)
        tgt = jnp.asarray(output_dict["tgt_corr_points"], jnp.float32)
        sub_idx, sel = self._host_selection(int(src.shape[0]))
        return _registration_device(
            src, tgt, jnp.asarray(gt_corrs), sub_idx, sel,
            jnp.asarray(rot_gt_raw, jnp.float32),
            jnp.asarray(trans_gt, jnp.float32).reshape(-1),
            thr2=float(self.distance_threshold) ** 2)

    # -------------------------------------------------- forward (fused device path)
    def forward(self, output_dict, data_dict):
        if "src_node_feats" in output_dict:
            c_precision = self.evaluate_coarse(output_dict)
        else:
            c_precision = 0.0
        if self.mode != "sim3":
            raise NotImplementedError("only colabsfm_mode == 'sim3' is implemented")

        src = jnp.asarray(output_dict["src_corr_points"], jnp.float32)
        tgt = jnp.asarray(output_dict["tgt_corr_points"], jnp.float32)
        n = int(src.shape[0])
        sub_idx, sel = self._host_selection(n)

        res = _forward_device(
            src, tgt, sub_idx, sel,
            jnp.asarray(data_dict["rot"][0], jnp.float32),
            jnp.asarray(data_dict["trans"][0], jnp.float32).reshape(-1),
            r2=float(self.acceptance_radius) ** 2,
            thr2=float(self.distance_threshold) ** 2,
            rot_thr=float(self.rot_thresh),
            trans_thr=float(self.trans_thresh))

        result = {
            "PIR": c_precision,
            "IR": res["precision"],
            "FMR": res["fmr"],
            "num_matches": n,
            "rot_error": res["rot_error"],
            "trans_error": res["trans_error"],
            "RR": res["rr"],
            "rmse": res["rmse"],
            "RR_rmse": res["rr_rmse"],
        }
        if self.return_pose:
            result["rot"] = res["rot_est"]
            result["trans"] = res["t_est"]
        return result

    __call__ = forward


# ----------------------------------------------------------------------------- main

if __name__ == "__main__":
    key = jax.random.PRNGKey(0)
    k1, k2, k3, k4, k5, k6, k7 = jax.random.split(key, 7)

    # Ground-truth sim3 transform: rotation about z, scale 1.1.
    theta = 0.3
    r_true = jnp.array([[math.cos(theta), -math.sin(theta), 0.0],
                        [math.sin(theta), math.cos(theta), 0.0],
                        [0.0, 0.0, 1.0]], dtype=jnp.float32)
    s_true = 1.1
    rot_data = s_true * r_true                       # data_dict rotation carries scale
    trans_gt = jnp.array([0.1, -0.2, 0.05], dtype=jnp.float32)

    n_corr = 48
    src_corr_points = jax.random.uniform(k1, (n_corr, 3), jnp.float32, -1.0, 1.0)
    noise = 0.005 * jax.random.normal(k2, (n_corr, 3), jnp.float32)
    tgt_corr_points = src_corr_points @ rot_data.T + trans_gt[None, :] + noise

    n_tgt_nodes, n_src_nodes = 12, 10
    tgt_nodes = jax.random.uniform(k3, (n_tgt_nodes, 3), jnp.float32)
    src_nodes = jax.random.uniform(k4, (n_src_nodes, 3), jnp.float32)

    n_gt_pairs, n_pred_pairs = 20, 16
    gt_t_idx = jax.random.randint(k5, (n_gt_pairs,), 0, n_tgt_nodes)
    gt_s_idx = jax.random.randint(k6, (n_gt_pairs,), 0, n_src_nodes)
    gt_node_corr_indices = jnp.stack([gt_t_idx, gt_s_idx], axis=1)
    gt_node_corr_overlaps = jax.random.uniform(k7, (n_gt_pairs,), jnp.float32)

    # Predicted node correspondences: first half copied from the gt list, rest random.
    pred_t = jnp.concatenate([gt_t_idx[: n_pred_pairs // 2],
                              jax.random.randint(k1, (n_pred_pairs // 2,), 0, n_tgt_nodes)])
    pred_s = jnp.concatenate([gt_s_idx[: n_pred_pairs // 2],
                              jax.random.randint(k2, (n_pred_pairs // 2,), 0, n_src_nodes)])

    output_dict = {
        "src_node_feats": jnp.zeros((n_src_nodes, 8), jnp.float32),  # triggers coarse eval
        "tgt_nodes": tgt_nodes,
        "src_nodes": src_nodes,
        "gt_node_corr_indices": gt_node_corr_indices,
        "gt_node_corr_overlaps": gt_node_corr_overlaps,
        "tgt_node_corr_indices": pred_t,
        "src_node_corr_indices": pred_s,
        "tgt_corr_points": tgt_corr_points,
        "src_corr_points": src_corr_points,
        "corr_scores": jax.random.uniform(k3, (n_corr,), jnp.float32),
    }
    data_dict = {
        "rot": rot_data[None, :, :],    # (1, 3, 3)
        "trans": trans_gt[None, :],     # (1, 3)
    }

    evaluator = EvaluatorRegistration(Cfg(), return_pose=True)
    result = evaluator(output_dict, data_dict)

    for v in result.values():
        if isinstance(v, jnp.ndarray):
            jax.block_until_ready(v)

    print("KERNEL_OK")
</pallas_src>

<mosaic_0001>
module attributes {stable_mosaic.version = 11 : i64} {
  func.func @_coarse_hit_kernel(%arg0: i32, %arg1: i32, %arg2: memref<1x128xi32, #tpu.memory_space<vmem>>, %arg3: memref<1x128xi32, #tpu.memory_space<vmem>>, %arg4: memref<1x128xf32, #tpu.memory_space<vmem>>, %arg5: memref<128x1xi32, #tpu.memory_space<vmem>>, %arg6: memref<128x1xi32, #tpu.memory_space<vmem>>, %arg7: memref<1x8x128xf32, #tpu.memory_space<vmem>>, %arg8: memref<128x1xf32, #tpu.memory_space<vmem>>) attributes {dimension_semantics = [#tpu.dimension_semantics<parallel>, #tpu.dimension_semantics<arbitrary>], iteration_bounds = array<i64: 1, 1>, scalar_prefetch = 0 : i64, scratch_operands = 1 : i64, tpu.core_type = #tpu.core_type<tc>, window_params = [{transform_indices = @transform_0, window_bounds = array<i64: 1, 128>}, {transform_indices = @transform_1, window_bounds = array<i64: 1, 128>}, {transform_indices = @transform_2, window_bounds = array<i64: 1, 128>}, {transform_indices = @transform_3, window_bounds = array<i64: 128, 1>}, {transform_indices = @transform_4, window_bounds = array<i64: 128, 1>}, {transform_indices = @transform_5, window_bounds = array<i64: 1, 8, 128>}]} {
    %c0_i32 = arith.constant 0 : i32
    %0 = arith.cmpi eq, %arg1, %c0_i32 : i32
    %1 = arith.extui %0 : i1 to i32
    %c0_i32_0 = arith.constant 0 : i32
    %2 = arith.cmpi ne, %1, %c0_i32_0 : i32
    scf.if %2 {
      %cst_17 = arith.constant 0.000000e+00 : f32
      %29 = vector.broadcast %cst_17 : f32 to vector<128x1xf32>
      %c0_18 = arith.constant 0 : index
      %c0_19 = arith.constant 0 : index
      %30 = vector.load %arg8[%c0_18, %c0_19] : memref<128x1xf32, #tpu.memory_space<vmem>>, vector<128x1xf32>
      tpu.vector_store %arg8[%c0_18, %c0_19], %29 {strides = array<i32>} : memref<128x1xf32, #tpu.memory_space<vmem>>, vector<128x1xf32>,
    } else {
    }
    %c0 = arith.constant 0 : index
    %c0_1 = arith.constant 0 : index
    %3 = vector.load %arg5[%c0, %c0_1] : memref<128x1xi32, #tpu.memory_space<vmem>>, vector<128x1xi32>
    %c0_2 = arith.constant 0 : index
    %c0_3 = arith.constant 0 : index
    %4 = vector.load %arg2[%c0_2, %c0_3] : memref<1x128xi32, #tpu.memory_space<vmem>>, vector<1x128xi32>
    %5 = vector.broadcast %3 : vector<128x1xi32> to vector<128x128xi32>
    %6 = vector.broadcast %4 : vector<1x128xi32> to vector<128x128xi32>
    %7 = arith.cmpi eq, %5, %6 : vector<128x128xi32>
    %c0_4 = arith.constant 0 : index
    %c0_5 = arith.constant 0 : index
    %8 = vector.load %arg6[%c0_4, %c0_5] : memref<128x1xi32, #tpu.memory_space<vmem>>, vector<128x1xi32>
    %c0_6 = arith.constant 0 : index
    %c0_7 = arith.constant 0 : index
    %9 = vector.load %arg3[%c0_6, %c0_7] : memref<1x128xi32, #tpu.memory_space<vmem>>, vector<1x128xi32>
    %10 = vector.broadcast %8 : vector<128x1xi32> to vector<128x128xi32>
    %11 = vector.broadcast %9 : vector<1x128xi32> to vector<128x128xi32>
    %12 = arith.cmpi eq, %10, %11 : vector<128x128xi32>
    %13 = arith.andi %7, %12 : vector<128x128xi1>
    %c0_8 = arith.constant 0 : index
    %c0_9 = arith.constant 0 : index
    %14 = vector.load %arg4[%c0_8, %c0_9] : memref<1x128xf32, #tpu.memory_space<vmem>>, vector<1x128xf32>
    %cst = arith.constant 1.000000e-01 : f32
    %15 = vector.broadcast %cst : f32 to vector<1x128xf32>
    %16 = arith.cmpf ogt, %14, %15 : vector<1x128xf32>
    %17 = vector.broadcast %16 : vector<1x128xi1> to vector<128x128xi1>
    %18 = arith.andi %13, %17 : vector<128x128xi1>
    %c0_10 = arith.constant 0 : index
    %c0_11 = arith.constant 0 : index
    %19 = vector.load %arg8[%c0_10, %c0_11] : memref<128x1xf32, #tpu.memory_space<vmem>>, vector<128x1xf32>
    %20 = arith.extui %18 : vector<128x128xi1> to vector<128x128xi32>
    %21 = arith.sitofp %20 : vector<128x128xi32> to vector<128x128xf32>
    %cst_12 = arith.constant dense<0xFF800000> : vector<128xf32>
    %22 = vector.multi_reduction <maximumf>, %21, %cst_12 [1] : vector<128x128xf32> to vector<128xf32>
    %23 = vector.shape_cast %22 : vector<128xf32> to vector<128x1xf32>
    %24 = arith.maximumf %19, %23 : vector<128x1xf32>
    %c0_13 = arith.constant 0 : index
    %c0_14 = arith.constant 0 : index
    %25 = vector.load %arg8[%c0_13, %c0_14] : memref<128x1xf32, #tpu.memory_space<vmem>>, vector<128x1xf32>
    tpu.vector_store %arg8[%c0_13, %c0_14], %24 {strides = array<i32>} : memref<128x1xf32, #tpu.memory_space<vmem>>, vector<128x1xf32>,
    %c0_i32_15 = arith.constant 0 : i32
    %26 = arith.cmpi eq, %arg1, %c0_i32_15 : i32
    %27 = arith.extui %26 : i1 to i32
    %c0_i32_16 = arith.constant 0 : i32
    %28 = arith.cmpi ne, %27, %c0_i32_16 : i32
    scf.if %28 {
      %c0_17 = arith.constant 0 : index
      %c0_18 = arith.constant 0 : index
      %29 = vector.load %arg8[%c0_17, %c0_18] : memref<128x1xf32, #tpu.memory_space<vmem>>, vector<128x1xf32>
      %30 = vector.shape_cast %29 : vector<128x1xf32> to vector<1x128x1xf32>
      %cst_19 = arith.constant dense<0.000000e+00> : vector<1xf32>
      %31 = vector.multi_reduction <add>, %30, %cst_19 [1, 2] : vector<1x128x1xf32> to vector<1xf32>
      %32 = vector.shape_cast %31 : vector<1xf32> to vector<1x1x1xf32>
      %33 = vector.extract %32[0, 0, 0] : f32 from vector<1x1x1xf32>
      %34 = vector.broadcast %33 : f32 to vector<1x8x128xf32>
      %c0_20 = arith.constant 0 : index
      %c0_21 = arith.constant 0 : index
      %c0_22 = arith.constant 0 : index
      %35 = vector.load %arg7[%c0_20, %c0_21, %c0_22] : memref<1x8x128xf32, #tpu.memory_space<vmem>>, vector<1x8x128xf32>
      tpu.vector_store %arg7[%c0_20, %c0_21, %c0_22], %34 {strides = array<i32>} : memref<1x8x128xf32, #tpu.memory_space<vmem>>, vector<1x8x128xf32>,
    } else {
    }
    return
  }
  func.func @transform_0(%arg0: i32, %arg1: i32) -> (i32, i32) {
    %c0_i32 = arith.constant 0 : i32
    %c0_i32_0 = arith.constant 0 : i32
    return %c0_i32, %arg1 : i32, i32
  }
  func.func @transform_1(%arg0: i32, %arg1: i32) -> (i32, i32) {
    %c0_i32 = arith.constant 0 : i32
    %c0_i32_0 = arith.constant 0 : i32
    return %c0_i32, %arg1 : i32, i32
  }
  func.func @transform_2(%arg0: i32, %arg1: i32) -> (i32, i32) {
    %c0_i32 = arith.constant 0 : i32
    %c0_i32_0 = arith.constant 0 : i32
    return %c0_i32, %arg1 : i32, i32
  }
  func.func @transform_3(%arg0: i32, %arg1: i32) -> (i32, i32) {
    %c0_i32 = arith.constant 0 : i32
    %c0_i32_0 = arith.constant 0 : i32
    return %arg0, %c0_i32 : i32, i32
  }
  func.func @transform_4(%arg0: i32, %arg1: i32) -> (i32, i32) {
    %c0_i32 = arith.constant 0 : i32
    %c0_i32_0 = arith.constant 0 : i32
    return %arg0, %c0_i32 : i32, i32
  }
  func.func @transform_5(%arg0: i32, %arg1: i32) -> (i32, i32, i32) {
    %c0_i32 = arith.constant 0 : i32
    %c0_i32_0 = arith.constant 0 : i32
    %c0_i32_1 = arith.constant 0 : i32
    return %arg0, %c0_i32, %c0_i32_0 : i32, i32, i32
  }
}

</mosaic_0001>

<llo_original>
// kernel: _coarse_precision_device.1
$region0: #{_coarse_precision_device.1}
  #allocation0 [shape = 'u32[]', space=smem, size = 0x4, offset = 0x4, fixed_abs, tag = 'smem constant byte address 0x4 - core index']
  #allocation1 [shape = 'u32[144,128]{1,0:T(1,128)}', space=vmem, size = 0x12000, scoped, tag = 'internal scratch']
  #allocation2 [shape = 'f32[128,1]{1,0:T(8,128)}', space=vmem, size = 0x10000, scoped, tag = 'scratch operand']
  %s0 = inlined_call_operand.vmem [shape: s32[1,128], index: 0, kind: input, shape index: {}]
  %s1 = inlined_call_operand.vmem [shape: s32[1,128], index: 1, kind: input, shape index: {}]
  %s2 = inlined_call_operand.vmem [shape: f32[1,128], index: 2, kind: input, shape index: {}]
  %s3 = inlined_call_operand.vmem [shape: s32[128,1], index: 3, kind: input, shape index: {}]
  %s4 = inlined_call_operand.vmem [shape: s32[128,1], index: 4, kind: input, shape index: {}]
  %s5 = inlined_call_operand.vmem [shape: f32[1,8,128], index: 5, kind: output, shape index: {}]
  %s6 = sld [smem:[#allocation0]]
  $region38: #{_coarse_precision_device.1} parent=0
    _
  %s8 = ssub.s32 1, %s6
  %s9 = scalar_select 0, %s8, %s6
  // Predicated region
  $region2: #{_coarse_precision_device.1} parent=0 // pred_check
    _
  $region3: #{_coarse_precision_device.1} parent=0 // pred_check_branch
    %11 = sbr.rel (0) target = $region5
  $region4: #{_coarse_precision_device.1} parent=0 // pred_region
    _
  $region5: #{_coarse_precision_device.1} parent=0 // pred_fallthru
    _
  // Predicated region
  $region6: #{_coarse_precision_device.1} parent=0 // pred_check
    _
  $region7: #{_coarse_precision_device.1} parent=0 // pred_check_branch
    %13 = sbr.rel (0) target = $region9
  $region8: #{_coarse_precision_device.1} parent=0 // pred_region
    _
  $region9: #{_coarse_precision_device.1} parent=0 // pred_fallthru
    _
  // Predicated region
  $region10: #{_coarse_precision_device.1} parent=0 // pred_check
    _
  $region11: #{_coarse_precision_device.1} parent=0 // pred_check_branch
    %15 = sbr.rel (0) target = $region13
  $region12: #{_coarse_precision_device.1} parent=0 // pred_region
    _
  $region13: #{_coarse_precision_device.1} parent=0 // pred_fallthru
    _
  // Predicated region
  $region14: #{_coarse_precision_device.1} parent=0 // pred_check
    _
  $region15: #{_coarse_precision_device.1} parent=0 // pred_check_branch
    %17 = sbr.rel (0) target = $region17
  $region16: #{_coarse_precision_device.1} parent=0 // pred_region
    _
  $region17: #{_coarse_precision_device.1} parent=0 // pred_fallthru
    _
  // Predicated region
  $region18: #{_coarse_precision_device.1} parent=0 // pred_check
    _
  $region19: #{_coarse_precision_device.1} parent=0 // pred_check_branch
    %19 = sbr.rel (0) target = $region21
  $region20: #{_coarse_precision_device.1} parent=0 // pred_region
    _
  $region21: #{_coarse_precision_device.1} parent=0 // pred_fallthru
    _
  %p20 = scmp.eq.s32.totalorder 0, 0
  // Predicated region
  $region22: #{_coarse_precision_device.1} parent=0 // pred_check
    %p21 = pneg %p20
  $region23: #{_coarse_precision_device.1} parent=0 // pred_check_branch
    %23 = sbr.rel (%p21) target = $region25
  $region24: #{_coarse_precision_device.1} parent=0 // pred_region
    %vm24 = vcmask 7168
    %25 = vst.msk [vmem:[#allocation2] sm:$0xff] %vm24, 0.0
    %26 = vst.msk [vmem:[#allocation2 + $0x8] sm:$0xff] %vm24, 0.0
    %27 = vst.msk [vmem:[#allocation2 + $0x10] sm:$0xff] %vm24, 0.0
    %28 = vst.msk [vmem:[#allocation2 + $0x18] sm:$0xff] %vm24, 0.0
    %29 = vst.msk [vmem:[#allocation2 + $0x20] sm:$0xff] %vm24, 0.0
    %30 = vst.msk [vmem:[#allocation2 + $0x28] sm:$0xff] %vm24, 0.0
    %31 = vst.msk [vmem:[#allocation2 + $0x30] sm:$0xff] %vm24, 0.0
    %32 = vst.msk [vmem:[#allocation2 + $0x38] sm:$0xff] %vm24, 0.0
    %33 = vst.msk [vmem:[#allocation2 + $0x40] sm:$0xff] %vm24, 0.0
    %34 = vst.msk [vmem:[#allocation2 + $0x48] sm:$0xff] %vm24, 0.0
    %35 = vst.msk [vmem:[#allocation2 + $0x50] sm:$0xff] %vm24, 0.0
    %36 = vst.msk [vmem:[#allocation2 + $0x58] sm:$0xff] %vm24, 0.0
    %37 = vst.msk [vmem:[#allocation2 + $0x60] sm:$0xff] %vm24, 0.0
    %38 = vst.msk [vmem:[#allocation2 + $0x68] sm:$0xff] %vm24, 0.0
    %39 = vst.msk [vmem:[#allocation2 + $0x70] sm:$0xff] %vm24, 0.0
    %40 = vst.msk [vmem:[#allocation2 + $0x78] sm:$0xff] %vm24, 0.0
  $region25: #{_coarse_precision_device.1} parent=0 // pred_fallthru
    _
  %v41 = vld [vmem:[%s3] sm:$0xff]
  %v42 = vld [vmem:[%s3 + $0x8] sm:$0xff]
  %v43 = vld [vmem:[%s3 + $0x10] sm:$0xff]
  %v44 = vld [vmem:[%s3 + $0x18] sm:$0xff]
  %v45 = vld [vmem:[%s3 + $0x20] sm:$0xff]
  %v46 = vld [vmem:[%s3 + $0x28] sm:$0xff]
  %v47 = vld [vmem:[%s3 + $0x30] sm:$0xff]
  %v48 = vld [vmem:[%s3 + $0x38] sm:$0xff]
  %v49 = vld [vmem:[%s3 + $0x40] sm:$0xff]
  %v50 = vld [vmem:[%s3 + $0x48] sm:$0xff]
  %v51 = vld [vmem:[%s3 + $0x50] sm:$0xff]
  %v52 = vld [vmem:[%s3 + $0x58] sm:$0xff]
  %v53 = vld [vmem:[%s3 + $0x60] sm:$0xff]
  %v54 = vld [vmem:[%s3 + $0x68] sm:$0xff]
  %v55 = vld [vmem:[%s3 + $0x70] sm:$0xff]
  %v56 = vld [vmem:[%s3 + $0x78] sm:$0xff]
  %v57 = vld [vmem:[%s0] sm:$0x1]
  %58 = vset.pattern.permute.xlu0 0
  %59 = vperm.xlu0 %58, %v41
  %v60 = vpop.permute.xlu0 %59
  %61 = vset.pattern.permute.xlu0 0
  %62 = vperm.xlu0 %61, %v42
  %v63 = vpop.permute.xlu0 %62
  %64 = vset.pattern.permute.xlu0 0
  %65 = vperm.xlu0 %64, %v43
  %v66 = vpop.permute.xlu0 %65
  %67 = vset.pattern.permute.xlu0 0
  %68 = vperm.xlu0 %67, %v44
  %v69 = vpop.permute.xlu0 %68
  %70 = vset.pattern.permute.xlu0 0
  %71 = vperm.xlu0 %70, %v45
  %v72 = vpop.permute.xlu0 %71
  %73 = vset.pattern.permute.xlu0 0
  %74 = vperm.xlu0 %73, %v46
  %v75 = vpop.permute.xlu0 %74
  %76 = vset.pattern.permute.xlu0 0
  %77 = vperm.xlu0 %76, %v47
  %v78 = vpop.permute.xlu0 %77
  %79 = vset.pattern.permute.xlu0 0
  %80 = vperm.xlu0 %79, %v48
  %v81 = vpop.permute.xlu0 %80
  %82 = vset.pattern.permute.xlu0 0
  %83 = vperm.xlu0 %82, %v49
  %v84 = vpop.permute.xlu0 %83
  %85 = vset.pattern.permute.xlu0 0
  %86 = vperm.xlu0 %85, %v50
  %v87 = vpop.permute.xlu0 %86
  %88 = vset.pattern.permute.xlu0 0
  %89 = vperm.xlu0 %88, %v51
  %v90 = vpop.permute.xlu0 %89
  %91 = vset.pattern.permute.xlu0 0
  %92 = vperm.xlu0 %91, %v52
  %v93 = vpop.permute.xlu0 %92
  %94 = vset.pattern.permute.xlu0 0
  %95 = vperm.xlu0 %94, %v53
  %v96 = vpop.permute.xlu0 %95
  %97 = vset.pattern.permute.xlu0 0
  %98 = vperm.xlu0 %97, %v54
  %v99 = vpop.permute.xlu0 %98
  %100 = vset.pattern.permute.xlu0 0
  %101 = vperm.xlu0 %100, %v55
  %v102 = vpop.permute.xlu0 %101
  %103 = vset.pattern.permute.xlu0 0
  %104 = vperm.xlu0 %103, %v56
  %v105 = vpop.permute.xlu0 %104
  %v106 = vlaneseq
  %v107 = vshrl.u32 %v106, 7
  %v108 = vsub.s32 0, %v107
  %v109 = vrot.slane %v57, %v108
  %vm110 = vcmp.eq.s32.totalorder %v60, %v109
  %vm111 = vcmp.eq.s32.totalorder %v63, %v109
  %vm112 = vcmp.eq.s32.totalorder %v66, %v109
  %vm113 = vcmp.eq.s32.totalorder %v69, %v109
  %vm114 = vcmp.eq.s32.totalorder %v72, %v109
  %vm115 = vcmp.eq.s32.totalorder %v75, %v109
  %vm116 = vcmp.eq.s32.totalorder %v78, %v109
  %vm117 = vcmp.eq.s32.totalorder %v81, %v109
  %vm118 = vcmp.eq.s32.totalorder %v84, %v109
  %vm119 = vcmp.eq.s32.totalorder %v87, %v109
  %vm120 = vcmp.eq.s32.totalorder %v90, %v109
  %vm121 = vcmp.eq.s32.totalorder %v93, %v109
  %vm122 = vcmp.eq.s32.totalorder %v96, %v109
  %vm123 = vcmp.eq.s32.totalorder %v99, %v109
  %vm124 = vcmp.eq.s32.totalorder %v102, %v109
  %vm125 = vcmp.eq.s32.totalorder %v105, %v109
  %v126 = vld [vmem:[%s4] sm:$0xff]
  %v127 = vld [vmem:[%s4 + $0x8] sm:$0xff]
  %v128 = vld [vmem:[%s4 + $0x10] sm:$0xff]
  %v129 = vld [vmem:[%s4 + $0x18] sm:$0xff]
  %v130 = vld [vmem:[%s4 + $0x20] sm:$0xff]
  %v131 = vld [vmem:[%s4 + $0x28] sm:$0xff]
  %v132 = vld [vmem:[%s4 + $0x30] sm:$0xff]
  %v133 = vld [vmem:[%s4 + $0x38] sm:$0xff]
  %v134 = vld [vmem:[%s4 + $0x40] sm:$0xff]
  %v135 = vld [vmem:[%s4 + $0x48] sm:$0xff]
  %v136 = vld [vmem:[%s4 + $0x50] sm:$0xff]
  %v137 = vld [vmem:[%s4 + $0x58] sm:$0xff]
  %v138 = vld [vmem:[%s4 + $0x60] sm:$0xff]
  %v139 = vld [vmem:[%s4 + $0x68] sm:$0xff]
  %v140 = vld [vmem:[%s4 + $0x70] sm:$0xff]
  %v141 = vld [vmem:[%s4 + $0x78] sm:$0xff]
  %v142 = vld [vmem:[%s1] sm:$0x1]
  %143 = vset.pattern.permute.xlu0 0
  %144 = vperm.xlu0 %143, %v126
  %v145 = vpop.permute.xlu0 %144
  %146 = vset.pattern.permute.xlu0 0
  %147 = vperm.xlu0 %146, %v127
  %v148 = vpop.permute.xlu0 %147
  %149 = vset.pattern.permute.xlu0 0
  %150 = vperm.xlu0 %149, %v128
  %v151 = vpop.permute.xlu0 %150
  %152 = vset.pattern.permute.xlu0 0
  %153 = vperm.xlu0 %152, %v129
  %v154 = vpop.permute.xlu0 %153
  %155 = vset.pattern.permute.xlu0 0
  %156 = vperm.xlu0 %155, %v130
  %v157 = vpop.permute.xlu0 %156
  %158 = vset.pattern.permute.xlu0 0
  %159 = vperm.xlu0 %158, %v131
  %v160 = vpop.permute.xlu0 %159
  %161 = vset.pattern.permute.xlu0 0
  %162 = vperm.xlu0 %161, %v132
  %v163 = vpop.permute.xlu0 %162
  %164 = vset.pattern.permute.xlu0 0
  %165 = vperm.xlu0 %164, %v133
  %v166 = vpop.permute.xlu0 %165
  %167 = vset.pattern.permute.xlu0 0
  %168 = vperm.xlu0 %167, %v134
  %v169 = vpop.permute.xlu0 %168
  %170 = vset.pattern.permute.xlu0 0
  %171 = vperm.xlu0 %170, %v135
  %v172 = vpop.permute.xlu0 %171
  %173 = vset.pattern.permute.xlu0 0
  %174 = vperm.xlu0 %173, %v136
  %v175 = vpop.permute.xlu0 %174
  %176 = vset.pattern.permute.xlu0 0
  %177 = vperm.xlu0 %176, %v137
  %v178 = vpop.permute.xlu0 %177
  %179 = vset.pattern.permute.xlu0 0
  %180 = vperm.xlu0 %179, %v138
  %v181 = vpop.permute.xlu0 %180
  %182 = vset.pattern.permute.xlu0 0
  %183 = vperm.xlu0 %182, %v139
  %v184 = vpop.permute.xlu0 %183
  %185 = vset.pattern.permute.xlu0 0
  %186 = vperm.xlu0 %185, %v140
  %v187 = vpop.permute.xlu0 %186
  %188 = vset.pattern.permute.xlu0 0
  %189 = vperm.xlu0 %188, %v141
  %v190 = vpop.permute.xlu0 %189
  %v191 = vlaneseq
  %v192 = vshrl.u32 %v191, 7
  %v193 = vsub.s32 0, %v192
  %v194 = vrot.slane %v142, %v193
  %vm195 = vcmp.eq.s32.totalorder %v145, %v194
  %vm196 = vcmp.eq.s32.totalorder %v148, %v194
  %vm197 = vcmp.eq.s32.totalorder %v151, %v194
  %vm198 = vcmp.eq.s32.totalorder %v154, %v194
  %vm199 = vcmp.eq.s32.totalorder %v157, %v194
  %vm200 = vcmp.eq.s32.totalorder %v160, %v194
  %vm201 = vcmp.eq.s32.totalorder %v163, %v194
  %vm202 = vcmp.eq.s32.totalorder %v166, %v194
  %vm203 = vcmp.eq.s32.totalorder %v169, %v194
  %vm204 = vcmp.eq.s32.totalorder %v172, %v194
  %vm205 = vcmp.eq.s32.totalorder %v175, %v194
  %vm206 = vcmp.eq.s32.totalorder %v178, %v194
  %vm207 = vcmp.eq.s32.totalorder %v181, %v194
  %vm208 = vcmp.eq.s32.totalorder %v184, %v194
  %vm209 = vcmp.eq.s32.totalorder %v187, %v194
  %vm210 = vcmp.eq.s32.totalorder %v190, %v194
  %vm211 = vmand %vm110, %vm195
  %vm212 = vmand %vm111, %vm196
  %vm213 = vmand %vm112, %vm197
  %vm214 = vmand %vm113, %vm198
  %vm215 = vmand %vm114, %vm199
  %vm216 = vmand %vm115, %vm200
  %vm217 = vmand %vm116, %vm201
  %vm218 = vmand %vm117, %vm202
  %vm219 = vmand %vm118, %vm203
  %vm220 = vmand %vm119, %vm204
  %vm221 = vmand %vm120, %vm205
  %vm222 = vmand %vm121, %vm206
  %vm223 = vmand %vm122, %vm207
  %vm224 = vmand %vm123, %vm208
  %vm225 = vmand %vm124, %vm209
  %vm226 = vmand %vm125, %vm210
  %v227 = vld [vmem:[%s2] sm:$0x1]
  %vm228 = vcmp.gt.f32.partialorder %v227, 0.1
  %v229 = vsel %vm228, 1, 0
  %v230 = vlaneseq
  %v231 = vshrl.u32 %v230, 7
  %v232 = vsub.s32 0, %v231
  %v233 = vrot.slane %v229, %v232
  %vm234 = vcmp.eq.s32.totalorder %v233, 1
  %vm235 = vmand %vm211, %vm234
  %vm236 = vmand %vm212, %vm234
  %vm237 = vmand %vm213, %vm234
  %vm238 = vmand %vm214, %vm234
  %vm239 = vmand %vm215, %vm234
  %vm240 = vmand %vm216, %vm234
  %vm241 = vmand %vm217, %vm234
  %vm242 = vmand %vm218, %vm234
  %vm243 = vmand %vm219, %vm234
  %vm244 = vmand %vm220, %vm234
  %vm245 = vmand %vm221, %vm234
  %vm246 = vmand %vm222, %vm234
  %vm247 = vmand %vm223, %vm234
  %vm248 = vmand %vm224, %vm234
  %vm249 = vmand %vm225, %vm234
  %vm250 = vmand %vm226, %vm234
  %v251 = vld [vmem:[#allocation2] sm:$0xff]
  %v252 = vld [vmem:[#allocation2 + $0x8] sm:$0xff]
  %v253 = vld [vmem:[#allocation2 + $0x10] sm:$0xff]
  %v254 = vld [vmem:[#allocation2 + $0x18] sm:$0xff]
  %v255 = vld [vmem:[#allocation2 + $0x20] sm:$0xff]
  %v256 = vld [vmem:[#allocation2 + $0x28] sm:$0xff]
  %v257 = vld [vmem:[#allocation2 + $0x30] sm:$0xff]
  %v258 = vld [vmem:[#allocation2 + $0x38] sm:$0xff]
  %v259 = vld [vmem:[#allocation2 + $0x40] sm:$0xff]
  %v260 = vld [vmem:[#allocation2 + $0x48] sm:$0xff]
  %v261 = vld [vmem:[#allocation2 + $0x50] sm:$0xff]
  %v262 = vld [vmem:[#allocation2 + $0x58] sm:$0xff]
  %v263 = vld [vmem:[#allocation2 + $0x60] sm:$0xff]
  %v264 = vld [vmem:[#allocation2 + $0x68] sm:$0xff]
  %v265 = vld [vmem:[#allocation2 + $0x70] sm:$0xff]
  %v266 = vld [vmem:[#allocation2 + $0x78] sm:$0xff]
  %v267 = vsel %vm235, 1, 0
  %v268 = vsel %vm236, 1, 0
  %v269 = vsel %vm237, 1, 0
  %v270 = vsel %vm238, 1, 0
  %v271 = vsel %vm239, 1, 0
  %v272 = vsel %vm240, 1, 0
  %v273 = vsel %vm241, 1, 0
  %v274 = vsel %vm242, 1, 0
  %v275 = vsel %vm243, 1, 0
  %v276 = vsel %vm244, 1, 0
  %v277 = vsel %vm245, 1, 0
  %v278 = vsel %vm246, 1, 0
  %v279 = vsel %vm247, 1, 0
  %v280 = vsel %vm248, 1, 0
  %v281 = vsel %vm249, 1, 0
  %v282 = vsel %vm250, 1, 0
  %v283 = vcvt.s32.f32 %v267
  %v284 = vcvt.s32.f32 %v268
  %v285 = vcvt.s32.f32 %v269
  %v286 = vcvt.s32.f32 %v270
  %v287 = vcvt.s32.f32 %v271
  %v288 = vcvt.s32.f32 %v272
  %v289 = vcvt.s32.f32 %v273
  %v290 = vcvt.s32.f32 %v274
  %v291 = vcvt.s32.f32 %v275
  %v292 = vcvt.s32.f32 %v276
  %v293 = vcvt.s32.f32 %v277
  %v294 = vcvt.s32.f32 %v278
  %v295 = vcvt.s32.f32 %v279
  %v296 = vcvt.s32.f32 %v280
  %v297 = vcvt.s32.f32 %v281
  %v298 = vcvt.s32.f32 %v282
  %299 = vmax.xlane.f32.xlu0 %v283
  %v300 = vpop.xlane.xlu0 %299
  %301 = vmax.xlane.f32.xlu0 %v284
  %v302 = vpop.xlane.xlu0 %301
  %303 = vmax.xlane.f32.xlu0 %v285
  %v304 = vpop.xlane.xlu0 %303
  %305 = vmax.xlane.f32.xlu0 %v286
  %v306 = vpop.xlane.xlu0 %305
  %307 = vmax.xlane.f32.xlu0 %v287
  %v308 = vpop.xlane.xlu0 %307
  %309 = vmax.xlane.f32.xlu0 %v288
  %v310 = vpop.xlane.xlu0 %309
  %311 = vmax.xlane.f32.xlu0 %v289
  %v312 = vpop.xlane.xlu0 %311
  %313 = vmax.xlane.f32.xlu0 %v290
  %v314 = vpop.xlane.xlu0 %313
  %315 = vmax.xlane.f32.xlu0 %v291
  %v316 = vpop.xlane.xlu0 %315
  %317 = vmax.xlane.f32.xlu0 %v292
  %v318 = vpop.xlane.xlu0 %317
  %319 = vmax.xlane.f32.xlu0 %v293
  %v320 = vpop.xlane.xlu0 %319
  %321 = vmax.xlane.f32.xlu0 %v294
  %v322 = vpop.xlane.xlu0 %321
  %323 = vmax.xlane.f32.xlu0 %v295
  %v324 = vpop.xlane.xlu0 %323
  %325 = vmax.xlane.f32.xlu0 %v296
  %v326 = vpop.xlane.xlu0 %325
  %327 = vmax.xlane.f32.xlu0 %v297
  %v328 = vpop.xlane.xlu0 %327
  %329 = vmax.xlane.f32.xlu0 %v298
  %v330 = vpop.xlane.xlu0 %329
  %v331 = vmax.f32 %v251, %v300
  %v332 = vmax.f32 %v252, %v302
  %v333 = vmax.f32 %v253, %v304
  %v334 = vmax.f32 %v254, %v306
  %v335 = vmax.f32 %v255, %v308
  %v336 = vmax.f32 %v256, %v310
  %v337 = vmax.f32 %v257, %v312
  %v338 = vmax.f32 %v258, %v314
  %v339 = vmax.f32 %v259, %v316
  %v340 = vmax.f32 %v260, %v318
  %v341 = vmax.f32 %v261, %v320
  %v342 = vmax.f32 %v262, %v322
  %v343 = vmax.f32 %v263, %v324
  %v344 = vmax.f32 %v264, %v326
  %v345 = vmax.f32 %v265, %v328
  %v346 = vmax.f32 %v266, %v330
  %vm347 = vcmask 7168
  %348 = vst.msk [vmem:[#allocation2] sm:$0xff] %vm347, %v331
  %349 = vst.msk [vmem:[#allocation2 + $0x8] sm:$0xff] %vm347, %v332
  %350 = vst.msk [vmem:[#allocation2 + $0x10] sm:$0xff] %vm347, %v333
  %351 = vst.msk [vmem:[#allocation2 + $0x18] sm:$0xff] %vm347, %v334
  %352 = vst.msk [vmem:[#allocation2 + $0x20] sm:$0xff] %vm347, %v335
  %353 = vst.msk [vmem:[#allocation2 + $0x28] sm:$0xff] %vm347, %v336
  %354 = vst.msk [vmem:[#allocation2 + $0x30] sm:$0xff] %vm347, %v337
  %355 = vst.msk [vmem:[#allocation2 + $0x38] sm:$0xff] %vm347, %v338
  %356 = vst.msk [vmem:[#allocation2 + $0x40] sm:$0xff] %vm347, %v339
  %357 = vst.msk [vmem:[#allocation2 + $0x48] sm:$0xff] %vm347, %v340
  %358 = vst.msk [vmem:[#allocation2 + $0x50] sm:$0xff] %vm347, %v341
  %359 = vst.msk [vmem:[#allocation2 + $0x58] sm:$0xff] %vm347, %v342
  %360 = vst.msk [vmem:[#allocation2 + $0x60] sm:$0xff] %vm347, %v343
  %361 = vst.msk [vmem:[#allocation2 + $0x68] sm:$0xff] %vm347, %v344
  %362 = vst.msk [vmem:[#allocation2 + $0x70] sm:$0xff] %vm347, %v345
  %363 = vst.msk [vmem:[#allocation2 + $0x78] sm:$0xff] %vm347, %v346
  // Predicated region
  $region26: #{_coarse_precision_device.1} parent=0 // pred_check
    %p364 = pneg %p20
  $region27: #{_coarse_precision_device.1} parent=0 // pred_check_branch
    %366 = sbr.rel (%p364) target = $region29
  $region28: #{_coarse_precision_device.1} parent=0 // pred_region
    %v367 = vld [vmem:[#allocation2] sm:$0xff]
    %v368 = vld [vmem:[#allocation2 + $0x8] sm:$0xff]
    %v369 = vld [vmem:[#allocation2 + $0x10] sm:$0xff]
    %v370 = vld [vmem:[#allocation2 + $0x18] sm:$0xff]
    %v371 = vld [vmem:[#allocation2 + $0x20] sm:$0xff]
    %v372 = vld [vmem:[#allocation2 + $0x28] sm:$0xff]
    %v373 = vld [vmem:[#allocation2 + $0x30] sm:$0xff]
    %v374 = vld [vmem:[#allocation2 + $0x38] sm:$0xff]
    %v375 = vld [vmem:[#allocation2 + $0x40] sm:$0xff]
    %v376 = vld [vmem:[#allocation2 + $0x48] sm:$0xff]
    %v377 = vld [vmem:[#allocation2 + $0x50] sm:$0xff]
    %v378 = vld [vmem:[#allocation2 + $0x58] sm:$0xff]
    %v379 = vld [vmem:[#allocation2 + $0x60] sm:$0xff]
    %v380 = vld [vmem:[#allocation2 + $0x68] sm:$0xff]
    %v381 = vld [vmem:[#allocation2 + $0x70] sm:$0xff]
    %v382 = vld [vmem:[#allocation2 + $0x78] sm:$0xff]
    %v383 = vsel %vm347, %v367, 0.0
    %v384 = vsel %vm347, %v368, 0.0
    %v385 = vadd.f32 %v383, %v384
    %v386 = vsel %vm347, %v369, 0.0
    %v387 = vadd.f32 %v385, %v386
    %v388 = vsel %vm347, %v370, 0.0
    %v389 = vadd.f32 %v387, %v388
    %v390 = vsel %vm347, %v371, 0.0
    %v391 = vadd.f32 %v389, %v390
    %v392 = vsel %vm347, %v372, 0.0
    %v393 = vadd.f32 %v391, %v392
    %v394 = vsel %vm347, %v373, 0.0
    %v395 = vadd.f32 %v393, %v394
    %v396 = vsel %vm347, %v374, 0.0
    %v397 = vadd.f32 %v395, %v396
    %v398 = vsel %vm347, %v375, 0.0
    %v399 = vadd.f32 %v397, %v398
    %v400 = vsel %vm347, %v376, 0.0
    %v401 = vadd.f32 %v399, %v400
    %v402 = vsel %vm347, %v377, 0.0
    %v403 = vadd.f32 %v401, %v402
    %v404 = vsel %vm347, %v378, 0.0
    %v405 = vadd.f32 %v403, %v404
    %v406 = vsel %vm347, %v379, 0.0
    %v407 = vadd.f32 %v405, %v406
    %v408 = vsel %vm347, %v380, 0.0
    %v409 = vadd.f32 %v407, %v408
    %v410 = vsel %vm347, %v381, 0.0
    %v411 = vadd.f32 %v409, %v410
    %v412 = vsel %vm347, %v382, 0.0
    %v413 = vadd.f32 %v411, %v412
    %414 = vadd.xlane.f32.xlu0 %v413
    %v415 = vpop.xlane.xlu0 %414
    %v416 = vrot.slane %v415, 4
    %v417 = vadd.f32 %v415, %v416
    %v418 = vrot.slane %v417, 2
    %v419 = vadd.f32 %v417, %v418
    %v420 = vrot.slane %v419, 1
    %v421 = vadd.f32 %v419, %v420
    %s422 = vtos %v421
    %v423 = vstv %s422
    %424 = vst [vmem:[%s5] sm:$0xff] %v423
  $region29: #{_coarse_precision_device.1} parent=0 // pred_fallthru
    _
  // Predicated region
  $region30: #{_coarse_precision_device.1} parent=0 // pred_check
    _
  $region31: #{_coarse_precision_device.1} parent=0 // pred_check_branch
    %426 = sbr.rel (0) target = $region33
  $region32: #{_coarse_precision_device.1} parent=0 // pred_region
    _
  $region33: #{_coarse_precision_device.1} parent=0 // pred_fallthru
    _
  // Predicated region
  $region34: #{_coarse_precision_device.1} parent=0 // pred_check
    _
  $region35: #{_coarse_precision_device.1} parent=0 // pred_check_branch
    %428 = sbr.rel (0) target = $region37
  $region36: #{_coarse_precision_device.1} parent=0 // pred_region
    _
  $region37: #{_coarse_precision_device.1} parent=0 // pred_fallthru
    _

</llo_original>
